<compile_context>
chip_gen: v7x
topology: tpu7x:2x2x1
jax: 0.10.0
libtpu: 0.0.40
codegen_flags: <defaults>
</compile_context>

<pallas_src>
import jax
import jax.numpy as jnp
from jax.experimental import pallas as pl
from jax.experimental.pallas import tpu as pltpu


def linear_relu_kernel(x_ref, w_ref, b_ref, o_ref):
    # x_ref: (TB, Din) VMEM   w_ref: (1, Din) VMEM   b_ref: (1,) SMEM   o_ref: (TB, 1) VMEM
    x = x_ref[...].astype(jnp.float32)          # (TB, Din)
    w = w_ref[...].astype(jnp.float32)          # (1, Din) -> broadcasts over rows
    # VPU elementwise multiply + XLU lane reduce (no MXU for this tiny contraction).
    y = jnp.sum(x * w, axis=-1, keepdims=True)  # (TB, 1), f32 accumulation
    y = y + b_ref[0]                            # scalar bias from SMEM
    o_ref[...] = jnp.maximum(y, 0.0).astype(o_ref.dtype)


def _pick_batch_tile(batch: int) -> int:
    """Largest tile <= 4096 rows that evenly divides the batch (VMEM-safe on v7x too)."""
    if batch <= 4096:
        return batch
    for tb in (4096, 2048, 1024, 512, 256, 128, 64, 32, 16, 8):
        if batch % tb == 0:
            return tb
    return batch  # fallback: single block


def net_forward(x, w, b):
    """y = relu(x @ w.T + b) for nn.Linear(Din -> Dout), Dout == 1."""
    B, Din = x.shape
    Dout = w.shape[0]
    assert Dout == 1, "kernel specialized for Linear(4, 1)"

    w_row = w.reshape(1, Din)          # wrapper-side layout plumbing (no in-kernel transpose)
    b_s = b.reshape(1).astype(jnp.float32)  # scalar bias, lives in SMEM

    tb = _pick_batch_tile(B)
    grid = (pl.cdiv(B, tb),)

    return pl.pallas_call(
        linear_relu_kernel,
        out_shape=jax.ShapeDtypeStruct((B, Dout), x.dtype),
        grid=grid,
        in_specs=[
            pl.BlockSpec((tb, Din), lambda i: (i, 0)),                  # batch-tiled activations
            pl.BlockSpec((1, Din), lambda i: (0, 0)),                   # weight row, resident
            pl.BlockSpec(memory_space=pltpu.MemorySpace.SMEM),          # scalar bias in SMEM
        ],
        out_specs=pl.BlockSpec((tb, Dout), lambda i: (i, 0)),
        compiler_params=pltpu.CompilerParams(
            dimension_semantics=("parallel",),   # shards batch loop across TCs on v7x; harmless elsewhere
        ),
    )(x, w_row, b_s)


if __name__ == "__main__":
    key = jax.random.PRNGKey(0)
    kx, kw, kb = jax.random.split(key, 3)

    B, Din, Dout = 8, 4, 1
    x = jax.random.normal(kx, (B, Din), dtype=jnp.float32)

    # Deterministic parameter init mirroring nn.Linear default:
    # uniform(-1/sqrt(in_features), 1/sqrt(in_features)).
    bound = 1.0 / (Din ** 0.5)
    w = jax.random.uniform(kw, (Dout, Din), minval=-bound, maxval=bound, dtype=jnp.float32)
    b = jax.random.uniform(kb, (Dout,), minval=-bound, maxval=bound, dtype=jnp.float32)

    y = net_forward(x, w, b)
    jax.block_until_ready(y)

    # Sanity check against pure-JAX reference.
    y_ref = jnp.maximum(x @ w.T + b, 0.0)
    assert y.shape == (B, Dout)
    assert jnp.allclose(y, y_ref, atol=1e-5, rtol=1e-5)

    print("KERNEL_OK")
</pallas_src>

<mosaic_0001>
module attributes {stable_mosaic.version = 11 : i64} {
  func.func @linear_relu_kernel(%arg0: i32, %arg1: memref<8x4xf32, #tpu.memory_space<vmem>>, %arg2: memref<1x4xf32, #tpu.memory_space<vmem>>, %arg3: memref<1xf32, #tpu.memory_space<smem>>, %arg4: memref<8x1xf32, #tpu.memory_space<vmem>>) attributes {dimension_semantics = [#tpu.dimension_semantics<parallel>], iteration_bounds = array<i64: 1>, scalar_prefetch = 0 : i64, scratch_operands = 0 : i64, tpu.core_type = #tpu.core_type<tc>, window_params = [{transform_indices = @transform_0, window_bounds = array<i64: 8, 4>}, {pipeline_mode = #tpu.pipeline_mode<synchronous>, transform_indices = @transform_1, window_bounds = array<i64: 1, 4>}, {transform_indices = @transform_2, window_bounds = array<i64: 1>}, {transform_indices = @transform_3, window_bounds = array<i64: 8, 1>}]} {
    %c0 = arith.constant 0 : index
    %c0_0 = arith.constant 0 : index
    %0 = vector.load %arg1[%c0, %c0_0] : memref<8x4xf32, #tpu.memory_space<vmem>>, vector<8x4xf32>
    %c0_1 = arith.constant 0 : index
    %c0_2 = arith.constant 0 : index
    %1 = vector.load %arg2[%c0_1, %c0_2] : memref<1x4xf32, #tpu.memory_space<vmem>>, vector<1x4xf32>
    %2 = vector.broadcast %1 : vector<1x4xf32> to vector<8x4xf32>
    %3 = arith.mulf %0, %2 : vector<8x4xf32>
    %cst = arith.constant dense<0.000000e+00> : vector<8xf32>
    %4 = vector.multi_reduction <add>, %3, %cst [1] : vector<8x4xf32> to vector<8xf32>
    %5 = vector.shape_cast %4 : vector<8xf32> to vector<8x1xf32>
    %c0_3 = arith.constant 0 : index
    %6 = memref.load %arg3[%c0_3] : memref<1xf32, #tpu.memory_space<smem>>
    %7 = vector.broadcast %6 : f32 to vector<8x1xf32>
    %8 = arith.addf %5, %7 : vector<8x1xf32>
    %cst_4 = arith.constant 0.000000e+00 : f32
    %9 = vector.broadcast %cst_4 : f32 to vector<8x1xf32>
    %10 = arith.maximumf %8, %9 : vector<8x1xf32>
    %c0_5 = arith.constant 0 : index
    %c0_6 = arith.constant 0 : index
    %11 = vector.load %arg4[%c0_5, %c0_6] : memref<8x1xf32, #tpu.memory_space<vmem>>, vector<8x1xf32>
    tpu.vector_store %arg4[%c0_5, %c0_6], %10 {strides = array<i32>} : memref<8x1xf32, #tpu.memory_space<vmem>>, vector<8x1xf32>,
    return
  }
  func.func @transform_0(%arg0: i32) -> (i32, i32) {
    %c0_i32 = arith.constant 0 : i32
    %c0_i32_0 = arith.constant 0 : i32
    return %arg0, %c0_i32 : i32, i32
  }
  func.func @transform_1(%arg0: i32) -> (i32, i32) {
    %c0_i32 = arith.constant 0 : i32
    %c0_i32_0 = arith.constant 0 : i32
    %c0_i32_1 = arith.constant 0 : i32
    return %c0_i32, %c0_i32_0 : i32, i32
  }
  func.func @transform_2(%arg0: i32) -> i32 {
    %c0_i32 = arith.constant 0 : i32
    %c0_i32_0 = arith.constant 0 : i32
    return %c0_i32 : i32
  }
  func.func @transform_3(%arg0: i32) -> (i32, i32) {
    %c0_i32 = arith.constant 0 : i32
    %c0_i32_0 = arith.constant 0 : i32
    return %arg0, %c0_i32 : i32, i32
  }
}

</mosaic_0001>

<llo_original>
// kernel: tpu_custom_call.1
$region0: #{tpu_custom_call.1}
  #allocation0 [shape = 'u32[]', space=smem, size = 0x4, offset = 0x4, fixed_abs, tag = 'smem constant byte address 0x4 - core index']
  #allocation1 [shape = 'u32[144,128]{1,0:T(1,128)}', space=vmem, size = 0x12000, scoped, tag = 'internal scratch']
  #allocation2 [shape = 'f32[1]{0:T(128)S(6)}', space=smem, size = 0x200, scoped, tag = 'scoped memory for tpu_custom_call.1']
  %s0 = inlined_call_operand.vmem [shape: f32[8,4], index: 0, kind: input, shape index: {}]
  %s1 = inlined_call_operand.vmem [shape: f32[1,4], index: 1, kind: input, shape index: {}]
  %s2 = inlined_call_operand.<no memory space> [shape: f32[1], index: 2, kind: input, shape index: {}]
  %s3 = inlined_call_operand.vmem [shape: f32[8,1], index: 3, kind: output, shape index: {}]
  %s4 = sld [smem:[#allocation0]]
  $region22: #{tpu_custom_call.1} parent=0
    _
  %s6 = ssub.s32 1, %s4
  %s7 = scalar_select 0, %s6, %s4
  %8 = sst [smem:[#allocation2]] %s2
  // Predicated region
  $region2: #{tpu_custom_call.1} parent=0 // pred_check
    _
  $region3: #{tpu_custom_call.1} parent=0 // pred_check_branch
    %10 = sbr.rel (0) target = $region5
  $region4: #{tpu_custom_call.1} parent=0 // pred_region
    _
  $region5: #{tpu_custom_call.1} parent=0 // pred_fallthru
    _
  // Predicated region
  $region6: #{tpu_custom_call.1} parent=0 // pred_check
    _
  $region7: #{tpu_custom_call.1} parent=0 // pred_check_branch
    %12 = sbr.rel (0) target = $region9
  $region8: #{tpu_custom_call.1} parent=0 // pred_region
    _
  $region9: #{tpu_custom_call.1} parent=0 // pred_fallthru
    _
  // Predicated region
  $region10: #{tpu_custom_call.1} parent=0 // pred_check
    _
  $region11: #{tpu_custom_call.1} parent=0 // pred_check_branch
    %14 = sbr.rel (0) target = $region13
  $region12: #{tpu_custom_call.1} parent=0 // pred_region
    _
  $region13: #{tpu_custom_call.1} parent=0 // pred_fallthru
    _
  %v15 = vld [vmem:[%s0] sm:$0xff]
  %v16 = vld [vmem:[%s1] sm:$0x1]
  %v18 = vlaneseq
  %v19 = vshrl.u32 %v18, 7
  %v20 = vsub.s32 0, %v19
  %v21 = vrot.slane %v16, %v20
  %v23 = vmul.f32 %v15, %v21
  %vm24 = vcmask 31744
  %v25 = vsel %vm24, %v23, 0.0
  %26 = vadd.xlane.f32.xlu0 %v25
  %v27 = vpop.xlane.xlu0 %26
  %s28 = sld [smem:[#allocation2]]
  %v29 = vstv %s28
  %v30 = vadd.f32 %v27, %v29
  %v31 = vmax.f32 %v30, 0.0
  %vm32 = vcmask 7168
  %33 = vst.msk [vmem:[%s3] sm:$0xff] %vm32, %v31
  // Predicated region
  $region14: #{tpu_custom_call.1} parent=0 // pred_check
    _
  $region15: #{tpu_custom_call.1} parent=0 // pred_check_branch
    %35 = sbr.rel (0) target = $region17
  $region16: #{tpu_custom_call.1} parent=0 // pred_region
    _
  $region17: #{tpu_custom_call.1} parent=0 // pred_fallthru
    _
  // Predicated region
  $region18: #{tpu_custom_call.1} parent=0 // pred_check
    _
  $region19: #{tpu_custom_call.1} parent=0 // pred_check_branch
    %37 = sbr.rel (0) target = $region21
  $region20: #{tpu_custom_call.1} parent=0 // pred_region
    _
  $region21: #{tpu_custom_call.1} parent=0 // pred_fallthru
    _

</llo_original>
